<compile_context>
chip_gen: v5e
topology: v5e:2x2
jax: 0.10.0
libtpu: 0.0.40
codegen_flags: <defaults>
</compile_context>

<pallas_src>
import functools

import jax
import jax.numpy as jnp
from jax import lax
from jax.experimental import pallas as pl
from jax.experimental.pallas import tpu as pltpu


def _round_up(x, m):
    return (x + m - 1) // m * m


def _alone_fused_kernel(x_ref, ak_ref, p_ref, prob_ref, rad_ref, *,
                        n, c, tv, h, k, o, col):
    """Fused stand-in ST-GCN backbone + `alone` head for the whole batch."""
    # Static slices of the single packed parameter buffer (one DMA descriptor
    # instead of six).  All orientations are already kernel-friendly:
    #   w_gc (H, C)   b_gc (H, 1) sublane-major   w_cls (H, K) pre-scaled 1/(T*V)
    #   b_cls (1, K)  w_fc (K, O)                 b_fc (1, O)
    P = p_ref[...]
    w_gc = P[:h, col["w_gc"]:col["w_gc"] + c]
    b_gc = P[:h, col["b_gc"]:col["b_gc"] + 1]
    w_cls = P[:h, col["w_cls"]:col["w_cls"] + k]
    b_cls = P[0:1, col["b_cls"]:col["b_cls"] + k]
    w_fc = P[:k, col["w_fc"]:col["w_fc"] + o]
    b_fc = P[0:1, col["b_fc"]:col["b_fc"] + o]

    a_kron = ak_ref[...]                                   # (TV, TV) = I_T (x) A
    ones_row = jnp.ones((1, tv), jnp.float32)              # pool row (hoisted)

    # ---------------- stand-in rad_stgcn backbone ----------------
    # Per-sample statically unrolled loop (N is tiny); every op is a plain
    # lane-dense 2-D matmul / VPU op -- no cross-tile reshapes anywhere.
    pooled_rows = []
    for i in range(n):
        xi = x_ref[i]                                                    # (C, TV)
        # 1x1 channel conv first (commutes with the linear graph mix).
        hi = jnp.dot(w_gc, xi, preferred_element_type=jnp.float32)       # (H, TV)
        # Spatial graph mix over vertices as a lane-dense matmul vs I_T (x) A.
        hi = jnp.dot(hi, a_kron, preferred_element_type=jnp.float32)     # (H, TV)
        hi = jnp.maximum(hi + b_gc, 0.0)                                 # bias+ReLU
        # Global (T, V) pool on the MXU (ones-row contraction over TV); the
        # 1/(T*V) mean scale is folded into w_cls.
        pooled_rows.append(
            lax.dot_general(ones_row, hi, (((1,), (1,)), ((), ())),
                            preferred_element_type=jnp.float32))         # (1, H)
    pooled = jnp.concatenate(pooled_rows, axis=0)                        # (N, H)

    # Classifier -> rad logits, written exactly once.
    rad = jnp.dot(pooled, w_cls, preferred_element_type=jnp.float32) + b_cls
    rad_ref[...] = rad                                                   # (N, K)

    # ---------------- `alone` head: fc_layer_1 + Softmax(-1) ----------------
    # Conv2d(num_class, output_class, 1) on (N, K, 1, 1) == linear over K.
    z = jnp.dot(rad, w_fc, preferred_element_type=jnp.float32) + b_fc    # (N, O)
    z = z - jnp.max(z, axis=-1, keepdims=True)
    e = jnp.exp(z)
    inv = pl.reciprocal(jnp.sum(e, axis=-1, keepdims=True), approx=True)  # EUP
    prob_ref[...] = e * inv                                              # (N, O)


def prepare_params(raw):
    """One-time parameter prep (outside the per-call hot path).

    Packs the six small weight/bias tensors into one lane-padded f32 buffer,
    folds the pooling 1/(T*V) scale into the classifier weight, and expands A
    into the lane-dense I_T (x) A used by the in-kernel graph mix.
    """
    A = raw["A"].astype(jnp.float32)
    T = raw["T"]
    w_gc = raw["w_gc"]
    H, C = w_gc.shape
    K = raw["w_cls"].shape[1]
    O = raw["w_fc"].shape[1]
    V = A.shape[0]
    tv = T * V

    col, off = {}, 0
    for name, width in (("w_gc", C), ("b_gc", 1), ("w_cls", K),
                        ("b_cls", K), ("w_fc", O), ("b_fc", O)):
        col[name] = off
        off += _round_up(width, 8)
    rows = max(H, K)

    packed = jnp.zeros((rows, off), jnp.float32)
    packed = packed.at[:H, col["w_gc"]:col["w_gc"] + C].set(w_gc)
    packed = packed.at[:H, col["b_gc"]:col["b_gc"] + 1].set(
        raw["b_gc"].reshape(H, 1))                                # sublane-major
    packed = packed.at[:H, col["w_cls"]:col["w_cls"] + K].set(
        raw["w_cls"] / float(tv))                                 # fold mean scale
    packed = packed.at[0:1, col["b_cls"]:col["b_cls"] + K].set(
        raw["b_cls"].reshape(1, K))
    packed = packed.at[:K, col["w_fc"]:col["w_fc"] + O].set(raw["w_fc"])
    packed = packed.at[0:1, col["b_fc"]:col["b_fc"] + O].set(
        raw["b_fc"].reshape(1, O))

    # TODO(synk): I_T (x) A is fine at toy T*V; at production shapes tile the
    #             graph mix over T instead of materialising the Kronecker product.
    a_kron = jnp.kron(jnp.eye(T, dtype=jnp.float32), A)          # (TV, TV)

    return {"packed": packed, "a_kron": a_kron, "col": col,
            "dims": dict(c=C, h=H, k=K, o=O, t=T, v=V)}


def alone_forward(x, prep):
    """x: (N, C, T, V) f32 -> (softmax output (N, O), rad_output (N, K, 1, 1))."""
    N, C, T, V = x.shape
    d = prep["dims"]
    assert (C, T, V) == (d["c"], d["t"], d["v"])
    H, K, O = d["h"], d["k"], d["o"]
    tv = T * V

    # FREE reshape (same HBM bytes as NCHW) -- no transpose, no extra kernel.
    x3 = x.reshape(N, C, tv)

    kernel = functools.partial(_alone_fused_kernel, n=N, c=C, tv=tv,
                               h=H, k=K, o=O, col=prep["col"])

    vmem = pl.BlockSpec(memory_space=pltpu.MemorySpace.VMEM)     # whole-array VMEM
    # Single no-grid invocation: every operand (<300 KiB total) is VMEM
    # resident and each output is written exactly once.
    prob, rad = pl.pallas_call(
        kernel,
        in_specs=[vmem, vmem, vmem],
        out_specs=(vmem, vmem),
        out_shape=(jax.ShapeDtypeStruct((N, O), jnp.float32),
                   jax.ShapeDtypeStruct((N, K), jnp.float32)),
    )(x3, prep["a_kron"], prep["packed"])

    rad_output = rad.reshape(N, K, 1, 1)     # match PyTorch (N, num_class, 1, 1)
    return prob, rad_output


def _reference_forward(x, raw):
    """Pure-JAX reference of the stand-in backbone + head."""
    A = raw["A"]
    hp = "highest"
    xa = jnp.einsum("nctv,vw->nctw", x, A, precision=hp)
    y = jnp.einsum("hc,nctw->nhtw", raw["w_gc"], xa, precision=hp)
    y = jnp.maximum(y + raw["b_gc"].reshape(1, -1, 1, 1), 0.0)
    pooled = jnp.mean(y, axis=(2, 3))                                   # (N, H)
    rad = jnp.dot(pooled, raw["w_cls"], precision=hp) + raw["b_cls"].reshape(1, -1)
    z = jnp.dot(rad, raw["w_fc"], precision=hp) + raw["b_fc"].reshape(1, -1)
    z = z - jnp.max(z, axis=-1, keepdims=True)
    e = jnp.exp(z)
    prob = e / jnp.sum(e, axis=-1, keepdims=True)
    return prob, rad.reshape(rad.shape[0], rad.shape[1], 1, 1)


if __name__ == "__main__":
    # small, deterministic shapes
    N, C_in, T, V = 2, 4, 16, 16
    hidden, num_class, output_class = 32, 16, 8

    key = jax.random.PRNGKey(0)
    kx, k1, k2, k3, k4, k5, k6 = jax.random.split(key, 7)

    x = jax.random.normal(kx, (N, C_in, T, V), dtype=jnp.float32)

    # deterministic normalized ring-graph adjacency (I + shifts, row-normalized)
    eye = jnp.eye(V, dtype=jnp.float32)
    ring = jnp.roll(eye, 1, axis=1) + jnp.roll(eye, -1, axis=1)
    A = eye + ring
    A = A / jnp.sum(A, axis=1, keepdims=True)

    raw = {
        "A": A, "T": T,
        "w_gc": 0.1 * jax.random.normal(k1, (hidden, C_in), jnp.float32),
        "b_gc": 0.1 * jax.random.normal(k2, (hidden,), jnp.float32),
        "w_cls": 0.1 * jax.random.normal(k3, (hidden, num_class), jnp.float32),
        "b_cls": 0.1 * jax.random.normal(k4, (num_class,), jnp.float32),
        # fc_layer_1 = Conv2d(num_class, output_class, 1): weight (O,K,1,1) -> stored (K,O)
        "w_fc": 0.1 * jax.random.normal(k5, (num_class, output_class), jnp.float32),
        "b_fc": 0.1 * jax.random.normal(k6, (output_class,), jnp.float32),
    }

    prep = prepare_params(raw)
    output, rad_output = alone_forward(x, prep)
    output = jax.block_until_ready(output)
    rad_output = jax.block_until_ready(rad_output)

    assert output.shape == (N, output_class)
    assert rad_output.shape == (N, num_class, 1, 1)

    # pure-JAX reference check (prob tolerance is loose because the kernel's
    # softmax uses the EUP approximate reciprocal)
    ref_prob, ref_rad = _reference_forward(x, raw)
    assert bool(jnp.allclose(rad_output, ref_rad, atol=2e-3, rtol=2e-3))
    assert bool(jnp.allclose(output, ref_prob, atol=2e-2, rtol=0))
    assert bool(jnp.allclose(jnp.sum(output, axis=-1), 1.0, atol=2e-2))

    print("KERNEL_OK")
</pallas_src>

<mosaic_0001>
module attributes {stable_mosaic.version = 11 : i64} {
  func.func @_alone_fused_kernel(%arg0: memref<2x4x256xf32, #tpu.memory_space<vmem>>, %arg1: memref<256x256xf32, #tpu.memory_space<vmem>>, %arg2: memref<32x64xf32, #tpu.memory_space<vmem>>, %arg3: memref<2x8xf32, #tpu.memory_space<vmem>>, %arg4: memref<2x16xf32, #tpu.memory_space<vmem>>) attributes {dimension_semantics = [], scalar_prefetch = 0 : i64, scratch_operands = 0 : i64, tpu.core_type = #tpu.core_type<tc>} {
    %c0 = arith.constant 0 : index
    %c0_0 = arith.constant 0 : index
    %0 = vector.load %arg2[%c0, %c0_0] : memref<32x64xf32, #tpu.memory_space<vmem>>, vector<32x64xf32>
    %1 = vector.extract_strided_slice %0 {offsets = [0, 0], sizes = [32, 4], strides = [1, 1]} : vector<32x64xf32> to vector<32x4xf32>
    %2 = vector.extract_strided_slice %0 {offsets = [0, 8], sizes = [32, 1], strides = [1, 1]} : vector<32x64xf32> to vector<32x1xf32>
    %3 = vector.extract_strided_slice %0 {offsets = [0, 16], sizes = [32, 16], strides = [1, 1]} : vector<32x64xf32> to vector<32x16xf32>
    %4 = vector.extract_strided_slice %0 {offsets = [0, 32], sizes = [1, 16], strides = [1, 1]} : vector<32x64xf32> to vector<1x16xf32>
    %5 = vector.extract_strided_slice %0 {offsets = [0, 48], sizes = [16, 8], strides = [1, 1]} : vector<32x64xf32> to vector<16x8xf32>
    %6 = vector.extract_strided_slice %0 {offsets = [0, 56], sizes = [1, 8], strides = [1, 1]} : vector<32x64xf32> to vector<1x8xf32>
    %c0_1 = arith.constant 0 : index
    %c0_2 = arith.constant 0 : index
    %7 = vector.load %arg1[%c0_1, %c0_2] : memref<256x256xf32, #tpu.memory_space<vmem>>, vector<256x256xf32>
    %cst = arith.constant 1.000000e+00 : f32
    %8 = vector.broadcast %cst : f32 to vector<1x256xf32>
    %c0_3 = arith.constant 0 : index
    %c0_4 = arith.constant 0 : index
    %c0_5 = arith.constant 0 : index
    %9 = vector.load %arg0[%c0_3, %c0_4, %c0_5] : memref<2x4x256xf32, #tpu.memory_space<vmem>>, vector<1x4x256xf32>
    %10 = vector.shape_cast %9 : vector<1x4x256xf32> to vector<4x256xf32>
    %cst_6 = arith.constant dense<0.000000e+00> : vector<32x256xf32>
    %11 = tpu.matmul %1, %10, %cst_6 {dimension_numbers = #tpu.dot_dimension_numbers<[1], [0], [0], [1], [0, 0, 1, 1], [], []>} : vector<32x4xf32>, vector<4x256xf32>, vector<32x256xf32> -> vector<32x256xf32>
    %cst_7 = arith.constant dense<0.000000e+00> : vector<32x256xf32>
    %12 = tpu.matmul %11, %7, %cst_7 {dimension_numbers = #tpu.dot_dimension_numbers<[1], [0], [0], [1], [0, 0, 1, 1], [], []>} : vector<32x256xf32>, vector<256x256xf32>, vector<32x256xf32> -> vector<32x256xf32>
    %13 = vector.broadcast %2 : vector<32x1xf32> to vector<32x256xf32>
    %14 = arith.addf %12, %13 : vector<32x256xf32>
    %cst_8 = arith.constant 0.000000e+00 : f32
    %15 = vector.broadcast %cst_8 : f32 to vector<32x256xf32>
    %16 = arith.maximumf %14, %15 : vector<32x256xf32>
    %cst_9 = arith.constant dense<0.000000e+00> : vector<1x32xf32>
    %17 = tpu.matmul %8, %16, %cst_9 {dimension_numbers = #tpu.dot_dimension_numbers<[1], [1], [0], [0], [0, 0, 1, 0], [], []>} : vector<1x256xf32>, vector<32x256xf32>, vector<1x32xf32> -> vector<1x32xf32>
    %c1 = arith.constant 1 : index
    %c0_10 = arith.constant 0 : index
    %c0_11 = arith.constant 0 : index
    %18 = vector.load %arg0[%c1, %c0_10, %c0_11] : memref<2x4x256xf32, #tpu.memory_space<vmem>>, vector<1x4x256xf32>
    %19 = vector.shape_cast %18 : vector<1x4x256xf32> to vector<4x256xf32>
    %cst_12 = arith.constant dense<0.000000e+00> : vector<32x256xf32>
    %20 = tpu.matmul %1, %19, %cst_12 {dimension_numbers = #tpu.dot_dimension_numbers<[1], [0], [0], [1], [0, 0, 1, 1], [], []>} : vector<32x4xf32>, vector<4x256xf32>, vector<32x256xf32> -> vector<32x256xf32>
    %cst_13 = arith.constant dense<0.000000e+00> : vector<32x256xf32>
    %21 = tpu.matmul %20, %7, %cst_13 {dimension_numbers = #tpu.dot_dimension_numbers<[1], [0], [0], [1], [0, 0, 1, 1], [], []>} : vector<32x256xf32>, vector<256x256xf32>, vector<32x256xf32> -> vector<32x256xf32>
    %22 = vector.broadcast %2 : vector<32x1xf32> to vector<32x256xf32>
    %23 = arith.addf %21, %22 : vector<32x256xf32>
    %cst_14 = arith.constant 0.000000e+00 : f32
    %24 = vector.broadcast %cst_14 : f32 to vector<32x256xf32>
    %25 = arith.maximumf %23, %24 : vector<32x256xf32>
    %cst_15 = arith.constant dense<0.000000e+00> : vector<1x32xf32>
    %26 = tpu.matmul %8, %25, %cst_15 {dimension_numbers = #tpu.dot_dimension_numbers<[1], [1], [0], [0], [0, 0, 1, 0], [], []>} : vector<1x256xf32>, vector<32x256xf32>, vector<1x32xf32> -> vector<1x32xf32>
    %27 = tpu.concatenate %17, %26 in 0 : vector<1x32xf32>, vector<1x32xf32> -> vector<2x32xf32>
    %cst_16 = arith.constant dense<0.000000e+00> : vector<2x16xf32>
    %28 = tpu.matmul %27, %3, %cst_16 {dimension_numbers = #tpu.dot_dimension_numbers<[1], [0], [0], [1], [0, 0, 1, 1], [], []>} : vector<2x32xf32>, vector<32x16xf32>, vector<2x16xf32> -> vector<2x16xf32>
    %29 = vector.broadcast %4 : vector<1x16xf32> to vector<2x16xf32>
    %30 = arith.addf %28, %29 : vector<2x16xf32>
    %c0_17 = arith.constant 0 : index
    %c0_18 = arith.constant 0 : index
    %31 = vector.load %arg4[%c0_17, %c0_18] : memref<2x16xf32, #tpu.memory_space<vmem>>, vector<2x16xf32>
    tpu.vector_store %arg4[%c0_17, %c0_18], %30 {strides = array<i32>} : memref<2x16xf32, #tpu.memory_space<vmem>>, vector<2x16xf32>,
    %cst_19 = arith.constant dense<0.000000e+00> : vector<2x8xf32>
    %32 = tpu.matmul %30, %5, %cst_19 {dimension_numbers = #tpu.dot_dimension_numbers<[1], [0], [0], [1], [0, 0, 1, 1], [], []>} : vector<2x16xf32>, vector<16x8xf32>, vector<2x8xf32> -> vector<2x8xf32>
    %33 = vector.broadcast %6 : vector<1x8xf32> to vector<2x8xf32>
    %34 = arith.addf %32, %33 : vector<2x8xf32>
    %cst_20 = arith.constant dense<0xFF800000> : vector<2xf32>
    %35 = vector.multi_reduction <maximumf>, %34, %cst_20 [1] : vector<2x8xf32> to vector<2xf32>
    %36 = vector.shape_cast %35 : vector<2xf32> to vector<2x1xf32>
    %37 = vector.broadcast %36 : vector<2x1xf32> to vector<2x8xf32>
    %38 = arith.subf %34, %37 : vector<2x8xf32>
    %39 = math.exp %38 : vector<2x8xf32>
    %cst_21 = arith.constant dense<0.000000e+00> : vector<2xf32>
    %40 = vector.multi_reduction <add>, %39, %cst_21 [1] : vector<2x8xf32> to vector<2xf32>
    %41 = vector.shape_cast %40 : vector<2xf32> to vector<2x1xf32>
    %42 = tpu.reciprocal %41 {approx = true} : vector<2x1xf32> -> vector<2x1xf32>
    %43 = vector.broadcast %42 : vector<2x1xf32> to vector<2x8xf32>
    %44 = arith.mulf %39, %43 : vector<2x8xf32>
    %c0_22 = arith.constant 0 : index
    %c0_23 = arith.constant 0 : index
    %45 = vector.load %arg3[%c0_22, %c0_23] : memref<2x8xf32, #tpu.memory_space<vmem>>, vector<2x8xf32>
    tpu.vector_store %arg3[%c0_22, %c0_23], %44 {strides = array<i32>} : memref<2x8xf32, #tpu.memory_space<vmem>>, vector<2x8xf32>,
    return
  }
}

</mosaic_0001>

<llo_original>
// kernel: tpu_custom_call.1
$region0: #{tpu_custom_call.1}
  #allocation0 [shape = 'u32[]', space=smem, size = 0x4, offset = 0x4, fixed_abs, tag = 'smem constant byte address 0x4 - core index']
  #allocation1 [shape = 'u32[72,128]{1,0:T(1,128)}', space=vmem, size = 0x9000, scoped, tag = 'internal scratch']
  %s0 = inlined_call_operand.hbm [shape: f32[2,4,256], index: 0, kind: input, shape index: {}]
  %s1 = inlined_call_operand.hbm [shape: f32[256,256], index: 1, kind: input, shape index: {}]
  %s2 = inlined_call_operand.hbm [shape: f32[32,64], index: 2, kind: input, shape index: {}]
  %s3 = inlined_call_operand.hbm [shape: f32[2,8], index: 3, kind: output, shape index: {0}]
  %s4 = inlined_call_operand.hbm [shape: f32[2,16], index: 4, kind: output, shape index: {1}]
  %5 = xla_tuple %s3, %s4
  %s6 = sld [smem:[#allocation0]]
  $region42: #{tpu_custom_call.1} parent=0
    _
  %s8 = ssub.s32 1, %s6
  %s9 = scalar_select 0, %s8, %s6
  $region1: #{tpu_custom_call.1} parent=0
    #allocation2 [shape = 'u8[8192]{0}', space=vmem, size = 0x2000, scoped, tag = 'input window, operand 0, single buffered']
    #allocation3 [shape = 's32[1]{0}', space=sflag, size = 0x4, scoped, tag = 'scoped memory for tpu_custom_call.1']
    #allocation4 [shape = 's32[1]{0}', space=sflag, size = 0x4, scoped, tag = 'scoped memory for tpu_custom_call.1']
    #allocation5 [shape = 'u8[262144]{0}', space=vmem, size = 0x40000, scoped, tag = 'input window, operand 1, single buffered']
    #allocation6 [shape = 's32[1]{0}', space=sflag, size = 0x4, scoped, tag = 'scoped memory for tpu_custom_call.1']
    #allocation7 [shape = 'u8[16384]{0}', space=vmem, size = 0x4000, scoped, tag = 'input window, operand 2, single buffered']
    #allocation8 [shape = 'u8[1024]{0}', space=vmem, size = 0x400, scoped, tag = 'output window, operand 0, single buffered']
    #allocation9 [shape = 'u8[1024]{0}', space=vmem, size = 0x400, scoped, tag = 'output window, operand 1, single buffered']
    #allocation10 [shape = 's32[1]{0}', space=sflag, size = 0x4, scoped, tag = 'scoped memory for tpu_custom_call.1']
    %10 = vsyncpa [#allocation3], 0
    %11 = vsyncpa [#allocation6], 0
    %12 = vsyncpa [#allocation4], 0
    %13 = vsyncpa [#allocation10], 0
    // Predicated region
    $region2: #{tpu_custom_call.1} parent=1 // pred_check
      _
    $region3: #{tpu_custom_call.1} parent=1 // pred_check_branch
      %15 = sbr.rel (0) target = $region5
    $region4: #{tpu_custom_call.1} parent=1 // pred_region
      %17 = vsyncadd [#allocation3], 0
      %s18 = sshll.u32 %s0, 4
      %s19 = int_to_ptr.hbm [resolvable:$true] %s18
      %s20 = sshll.u32 [#allocation2], 4
      %s21 = int_to_ptr.vmem [resolvable:$true] %s20
      %26 = dma.hbm_to_vmem [thread:$0]  %s19, 256, %s21, [#allocation3], 128, 128, 8
    $region5: #{tpu_custom_call.1} parent=1 // pred_fallthru
      _
    // Predicated region
    $region6: #{tpu_custom_call.1} parent=1 // pred_check
      _
    $region7: #{tpu_custom_call.1} parent=1 // pred_check_branch
      %28 = sbr.rel (0) target = $region9
    $region8: #{tpu_custom_call.1} parent=1 // pred_region
      %30 = vsyncadd [#allocation6], 0
      %s31 = sshll.u32 %s1, 4
      %s32 = int_to_ptr.hbm [resolvable:$true] %s31
      %s33 = sshll.u32 [#allocation5], 4
      %s34 = int_to_ptr.vmem [resolvable:$true] %s33
      %39 = dma.hbm_to_vmem [thread:$0]  %s32, 8192, %s34, [#allocation6], 256, 256, 16
    $region9: #{tpu_custom_call.1} parent=1 // pred_fallthru
      _
    // Predicated region
    $region10: #{tpu_custom_call.1} parent=1 // pred_check
      _
    $region11: #{tpu_custom_call.1} parent=1 // pred_check_branch
      %41 = sbr.rel (0) target = $region13
    $region12: #{tpu_custom_call.1} parent=1 // pred_region
      %43 = vsyncadd [#allocation6], 0
      %s44 = sshll.u32 %s2, 4
      %s45 = int_to_ptr.hbm [resolvable:$true] %s44
      %s46 = sshll.u32 [#allocation7], 4
      %s47 = int_to_ptr.vmem [resolvable:$true] %s46
      %52 = dma.hbm_to_vmem [thread:$0]  %s45, 512, %s47, [#allocation6], 128, 128, 8
    $region13: #{tpu_custom_call.1} parent=1 // pred_fallthru
      _
    // Predicated region
    $region14: #{tpu_custom_call.1} parent=1 // pred_check
      _
    $region15: #{tpu_custom_call.1} parent=1 // pred_check_branch
      %54 = sbr.rel (0) target = $region17
    $region16: #{tpu_custom_call.1} parent=1 // pred_region
      %56 = dma.done [#allocation3], 256
    $region17: #{tpu_custom_call.1} parent=1 // pred_fallthru
      _
    // Predicated region
    $region18: #{tpu_custom_call.1} parent=1 // pred_check
      _
    $region19: #{tpu_custom_call.1} parent=1 // pred_check_branch
      %58 = sbr.rel (0) target = $region21
    $region20: #{tpu_custom_call.1} parent=1 // pred_region
      %60 = dma.done [#allocation6], 8192
    $region21: #{tpu_custom_call.1} parent=1 // pred_fallthru
      _
    // Predicated region
    $region22: #{tpu_custom_call.1} parent=1 // pred_check
      _
    $region23: #{tpu_custom_call.1} parent=1 // pred_check_branch
      %62 = sbr.rel (0) target = $region25
    $region24: #{tpu_custom_call.1} parent=1 // pred_region
      %64 = dma.done [#allocation6], 512
    $region25: #{tpu_custom_call.1} parent=1 // pred_fallthru
      _
    %v65 = vld [vmem:[#allocation7] sm:$0xff]
    %v66 = vld [vmem:[#allocation7 + $0x8] sm:$0xff]
    %v67 = vld [vmem:[#allocation7 + $0x10] sm:$0xff]
    %v68 = vld [vmem:[#allocation7 + $0x18] sm:$0xff]
    %v69 = vld [vmem:[#allocation5] sm:$0xff]
    %v70 = vld [vmem:[#allocation5 + $0x8] sm:$0xff]
    %v71 = vld [vmem:[#allocation5 + $0x10] sm:$0xff]
    %v72 = vld [vmem:[#allocation5 + $0x18] sm:$0xff]
    %v73 = vld [vmem:[#allocation5 + $0x20] sm:$0xff]
    %v74 = vld [vmem:[#allocation5 + $0x28] sm:$0xff]
    %v75 = vld [vmem:[#allocation5 + $0x30] sm:$0xff]
    %v76 = vld [vmem:[#allocation5 + $0x38] sm:$0xff]
    %v77 = vld [vmem:[#allocation5 + $0x40] sm:$0xff]
    %v78 = vld [vmem:[#allocation5 + $0x48] sm:$0xff]
    %v79 = vld [vmem:[#allocation5 + $0x50] sm:$0xff]
    %v80 = vld [vmem:[#allocation5 + $0x58] sm:$0xff]
    %v81 = vld [vmem:[#allocation5 + $0x60] sm:$0xff]
    %v82 = vld [vmem:[#allocation5 + $0x68] sm:$0xff]
    %v83 = vld [vmem:[#allocation5 + $0x70] sm:$0xff]
    %v84 = vld [vmem:[#allocation5 + $0x78] sm:$0xff]
    %v85 = vld [vmem:[#allocation5 + $0x80] sm:$0xff]
    %v86 = vld [vmem:[#allocation5 + $0x88] sm:$0xff]
    %v87 = vld [vmem:[#allocation5 + $0x90] sm:$0xff]
    %v88 = vld [vmem:[#allocation5 + $0x98] sm:$0xff]
    %v89 = vld [vmem:[#allocation5 + $0xa0] sm:$0xff]
    %v90 = vld [vmem:[#allocation5 + $0xa8] sm:$0xff]
    %v91 = vld [vmem:[#allocation5 + $0xb0] sm:$0xff]
    %v92 = vld [vmem:[#allocation5 + $0xb8] sm:$0xff]
    %v93 = vld [vmem:[#allocation5 + $0xc0] sm:$0xff]
    %v94 = vld [vmem:[#allocation5 + $0xc8] sm:$0xff]
    %v95 = vld [vmem:[#allocation5 + $0xd0] sm:$0xff]
    %v96 = vld [vmem:[#allocation5 + $0xd8] sm:$0xff]
    %v97 = vld [vmem:[#allocation5 + $0xe0] sm:$0xff]
    %v98 = vld [vmem:[#allocation5 + $0xe8] sm:$0xff]
    %v99 = vld [vmem:[#allocation5 + $0xf0] sm:$0xff]
    %v100 = vld [vmem:[#allocation5 + $0xf8] sm:$0xff]
    %v101 = vld [vmem:[#allocation5 + $0x100] sm:$0xff]
    %v102 = vld [vmem:[#allocation5 + $0x108] sm:$0xff]
    %v103 = vld [vmem:[#allocation5 + $0x110] sm:$0xff]
    %v104 = vld [vmem:[#allocation5 + $0x118] sm:$0xff]
    %v105 = vld [vmem:[#allocation5 + $0x120] sm:$0xff]
    %v106 = vld [vmem:[#allocation5 + $0x128] sm:$0xff]
    %v107 = vld [vmem:[#allocation5 + $0x130] sm:$0xff]
    %v108 = vld [vmem:[#allocation5 + $0x138] sm:$0xff]
    %v109 = vld [vmem:[#allocation5 + $0x140] sm:$0xff]
    %v110 = vld [vmem:[#allocation5 + $0x148] sm:$0xff]
    %v111 = vld [vmem:[#allocation5 + $0x150] sm:$0xff]
    %v112 = vld [vmem:[#allocation5 + $0x158] sm:$0xff]
    %v113 = vld [vmem:[#allocation5 + $0x160] sm:$0xff]
    %v114 = vld [vmem:[#allocation5 + $0x168] sm:$0xff]
    %v115 = vld [vmem:[#allocation5 + $0x170] sm:$0xff]
    %v116 = vld [vmem:[#allocation5 + $0x178] sm:$0xff]
    %v117 = vld [vmem:[#allocation5 + $0x180] sm:$0xff]
    %v118 = vld [vmem:[#allocation5 + $0x188] sm:$0xff]
    %v119 = vld [vmem:[#allocation5 + $0x190] sm:$0xff]
    %v120 = vld [vmem:[#allocation5 + $0x198] sm:$0xff]
    %v121 = vld [vmem:[#allocation5 + $0x1a0] sm:$0xff]
    %v122 = vld [vmem:[#allocation5 + $0x1a8] sm:$0xff]
    %v123 = vld [vmem:[#allocation5 + $0x1b0] sm:$0xff]
    %v124 = vld [vmem:[#allocation5 + $0x1b8] sm:$0xff]
    %v125 = vld [vmem:[#allocation5 + $0x1c0] sm:$0xff]
    %v126 = vld [vmem:[#allocation5 + $0x1c8] sm:$0xff]
    %v127 = vld [vmem:[#allocation5 + $0x1d0] sm:$0xff]
    %v128 = vld [vmem:[#allocation5 + $0x1d8] sm:$0xff]
    %v129 = vld [vmem:[#allocation5 + $0x1e0] sm:$0xff]
    %v130 = vld [vmem:[#allocation5 + $0x1e8] sm:$0xff]
    %v131 = vld [vmem:[#allocation5 + $0x1f0] sm:$0xff]
    %v132 = vld [vmem:[#allocation5 + $0x1f8] sm:$0xff]
    %v133 = vld [vmem:[#allocation2] sm:$0xff]
    %135 = vst [vmem:[#allocation1] ss:$2 sm:$0xff] %v133
    %v136 = vld.sshfl [vmem:[#allocation1] sm:$0xff pattern:$0x75316420]
    %v137 = vld.sshfl [vmem:[#allocation1 + $0x8] sm:$0xff pattern:$0x75316420]
    %vm138 = vcmask 31744
    %v140 = vsel %vm138, %v65, 0
    %v143 = vsel %vm138, %v66, 0
    %v146 = vsel %vm138, %v67, 0
    %v149 = vsel %vm138, %v68, 0
    %vm151 = vcmask 1043456
    %v152 = vsel %vm151, %v136, 0
    %v154 = vsel %vm151, %v137, 0
    %156 = vmatpush.msra.mxu0 0.0
    %157 = vmatpush.msra.mxu0 0.0
    %158 = vmatpush.msra.mxu0 0.0
    %159 = vmatpush.msra.mxu0 0.0
    %160 = vmatpush.msra.mxu0 0.0
    %161 = vmatpush.msra.mxu0 0.0
    %162 = vmatpush.msra.mxu0 0.0
    %163 = vmatpush.msra.mxu0 0.0
    %164 = vmatpush.msra.mxu0 0.0
    %165 = vmatpush.msra.mxu0 0.0
    %166 = vmatpush.msra.mxu0 0.0
    %167 = vmatpush.msra.mxu0 0.0
    %168 = vmatpush.msra.mxu0 0.0
    %169 = vmatpush.msra.mxu0 0.0
    %170 = vmatpush.msra.mxu0 0.0
    %171 = vmatpush.msra.mxu0 %v152
    %172 = vmatmul.f32.gmra.mxu0 %v140
    %v173 = vpop.f32.mrf.mxu0
    %v174 = vadd.f32 0.0, %v173
    %175 = vmatmul.f32.gmra.mxu0 %v143
    %v176 = vpop.f32.mrf.mxu0
    %v177 = vadd.f32 0.0, %v176
    %178 = vmatmul.f32.gmra.mxu0 %v146
    %v179 = vpop.f32.mrf.mxu0
    %v180 = vadd.f32 0.0, %v179
    %181 = vmatmul.f32.gmra.mxu0 %v149
    %v182 = vpop.f32.mrf.mxu0
    %v183 = vadd.f32 0.0, %v182
    %184 = vdwg.mxu0
    %185 = vmatpush.msra.mxu0 0.0
    %186 = vmatpush.msra.mxu0 0.0
    %187 = vmatpush.msra.mxu0 0.0
    %188 = vmatpush.msra.mxu0 0.0
    %189 = vmatpush.msra.mxu0 0.0
    %190 = vmatpush.msra.mxu0 0.0
    %191 = vmatpush.msra.mxu0 0.0
    %192 = vmatpush.msra.mxu0 0.0
    %193 = vmatpush.msra.mxu0 0.0
    %194 = vmatpush.msra.mxu0 0.0
    %195 = vmatpush.msra.mxu0 0.0
    %196 = vmatpush.msra.mxu0 0.0
    %197 = vmatpush.msra.mxu0 0.0
    %198 = vmatpush.msra.mxu0 0.0
    %199 = vmatpush.msra.mxu0 0.0
    %200 = vmatpush.msra.mxu0 %v154
    %201 = vmatmul.f32.gmra.mxu0 %v140
    %v202 = vpop.f32.mrf.mxu0
    %v203 = vadd.f32 0.0, %v202
    %204 = vmatmul.f32.gmra.mxu0 %v143
    %v205 = vpop.f32.mrf.mxu0
    %v206 = vadd.f32 0.0, %v205
    %207 = vmatmul.f32.gmra.mxu0 %v146
    %v208 = vpop.f32.mrf.mxu0
    %v209 = vadd.f32 0.0, %v208
    %210 = vmatmul.f32.gmra.mxu0 %v149
    %v211 = vpop.f32.mrf.mxu0
    %v212 = vadd.f32 0.0, %v211
    %213 = vdwg.mxu0
    %214 = vset.pattern.permute.xlu0 8
    %215 = vperm.xlu0 %214, %v65
    %v216 = vpop.permute.xlu0 %215
    %218 = vset.pattern.permute.xlu0 8
    %219 = vperm.xlu0 %218, %v66
    %v220 = vpop.permute.xlu0 %219
    %222 = vset.pattern.permute.xlu0 8
    %223 = vperm.xlu0 %222, %v67
    %v224 = vpop.permute.xlu0 %223
    %226 = vset.pattern.permute.xlu0 8
    %227 = vperm.xlu0 %226, %v68
    %v228 = vpop.permute.xlu0 %227
    %230 = vmatpush.msra.mxu0 %v99
    %231 = vmatpush.msra.mxu0 %v97
    %232 = vmatpush.msra.mxu0 %v95
    %233 = vmatpush.msra.mxu0 %v93
    %234 = vmatpush.msra.mxu0 %v91
    %235 = vmatpush.msra.mxu0 %v89
    %236 = vmatpush.msra.mxu0 %v87
    %237 = vmatpush.msra.mxu0 %v85
    %238 = vmatpush.msra.mxu0 %v83
    %239 = vmatpush.msra.mxu0 %v81
    %240 = vmatpush.msra.mxu0 %v79
    %241 = vmatpush.msra.mxu0 %v77
    %242 = vmatpush.msra.mxu0 %v75
    %243 = vmatpush.msra.mxu0 %v73
    %244 = vmatpush.msra.mxu0 %v71
    %245 = vmatpush.msra.mxu0 %v69
    %246 = vmatmul.f32.gmra.mxu0 %v174
    %v247 = vpop.f32.mrf.mxu0
    %v248 = vadd.f32 %v216, %v247
    %249 = vmatmul.f32.gmra.mxu0 %v177
    %v250 = vpop.f32.mrf.mxu0
    %v251 = vadd.f32 %v220, %v250
    %252 = vmatmul.f32.gmra.mxu0 %v180
    %v253 = vpop.f32.mrf.mxu0
    %v254 = vadd.f32 %v224, %v253
    %255 = vmatmul.f32.gmra.mxu0 %v183
    %v256 = vpop.f32.mrf.mxu0
    %v257 = vadd.f32 %v228, %v256
    %258 = vdwg.mxu0
    %259 = vmatpush.msra.mxu0 %v131
    %260 = vmatpush.msra.mxu0 %v129
    %261 = vmatpush.msra.mxu0 %v127
    %262 = vmatpush.msra.mxu0 %v125
    %263 = vmatpush.msra.mxu0 %v123
    %264 = vmatpush.msra.mxu0 %v121
    %265 = vmatpush.msra.mxu0 %v119
    %266 = vmatpush.msra.mxu0 %v117
    %267 = vmatpush.msra.mxu0 %v115
    %268 = vmatpush.msra.mxu0 %v113
    %269 = vmatpush.msra.mxu0 %v111
    %270 = vmatpush.msra.mxu0 %v109
    %271 = vmatpush.msra.mxu0 %v107
    %272 = vmatpush.msra.mxu0 %v105
    %273 = vmatpush.msra.mxu0 %v103
    %274 = vmatpush.msra.mxu0 %v101
    %275 = vmatmul.f32.gmra.mxu0 %v203
    %v276 = vpop.f32.mrf.mxu0
    %v277 = vadd.f32 %v248, %v276
    %278 = vmatmul.f32.gmra.mxu0 %v206
    %v279 = vpop.f32.mrf.mxu0
    %v280 = vadd.f32 %v251, %v279
    %281 = vmatmul.f32.gmra.mxu0 %v209
    %v282 = vpop.f32.mrf.mxu0
    %v283 = vadd.f32 %v254, %v282
    %284 = vmatmul.f32.gmra.mxu0 %v212
    %v285 = vpop.f32.mrf.mxu0
    %v286 = vadd.f32 %v257, %v285
    %287 = vdwg.mxu0
    %288 = vmatpush.msra.mxu0 %v100
    %289 = vmatpush.msra.mxu0 %v98
    %290 = vmatpush.msra.mxu0 %v96
    %291 = vmatpush.msra.mxu0 %v94
    %292 = vmatpush.msra.mxu0 %v92
    %293 = vmatpush.msra.mxu0 %v90
    %294 = vmatpush.msra.mxu0 %v88
    %295 = vmatpush.msra.mxu0 %v86
    %296 = vmatpush.msra.mxu0 %v84
    %297 = vmatpush.msra.mxu0 %v82
    %298 = vmatpush.msra.mxu0 %v80
    %299 = vmatpush.msra.mxu0 %v78
    %300 = vmatpush.msra.mxu0 %v76
    %301 = vmatpush.msra.mxu0 %v74
    %302 = vmatpush.msra.mxu0 %v72
    %303 = vmatpush.msra.mxu0 %v70
    %304 = vmatmul.f32.gmra.mxu0 %v174
    %v305 = vpop.f32.mrf.mxu0
    %v306 = vadd.f32 %v216, %v305
    %307 = vmatmul.f32.gmra.mxu0 %v177
    %v308 = vpop.f32.mrf.mxu0
    %v309 = vadd.f32 %v220, %v308
    %310 = vmatmul.f32.gmra.mxu0 %v180
    %v311 = vpop.f32.mrf.mxu0
    %v312 = vadd.f32 %v224, %v311
    %313 = vmatmul.f32.gmra.mxu0 %v183
    %v314 = vpop.f32.mrf.mxu0
    %v315 = vadd.f32 %v228, %v314
    %316 = vdwg.mxu0
    %317 = vmatpush.msra.mxu0 %v132
    %318 = vmatpush.msra.mxu0 %v130
    %319 = vmatpush.msra.mxu0 %v128
    %320 = vmatpush.msra.mxu0 %v126
    %321 = vmatpush.msra.mxu0 %v124
    %322 = vmatpush.msra.mxu0 %v122
    %323 = vmatpush.msra.mxu0 %v120
    %324 = vmatpush.msra.mxu0 %v118
    %325 = vmatpush.msra.mxu0 %v116
    %326 = vmatpush.msra.mxu0 %v114
    %327 = vmatpush.msra.mxu0 %v112
    %328 = vmatpush.msra.mxu0 %v110
    %329 = vmatpush.msra.mxu0 %v108
    %330 = vmatpush.msra.mxu0 %v106
    %331 = vmatpush.msra.mxu0 %v104
    %332 = vmatpush.msra.mxu0 %v102
    %333 = vmatmul.f32.gmra.mxu0 %v203
    %v334 = vpop.f32.mrf.mxu0
    %v335 = vadd.f32 %v306, %v334
    %336 = vmatmul.f32.gmra.mxu0 %v206
    %v337 = vpop.f32.mrf.mxu0
    %v338 = vadd.f32 %v309, %v337
    %339 = vmatmul.f32.gmra.mxu0 %v209
    %v340 = vpop.f32.mrf.mxu0
    %v341 = vadd.f32 %v312, %v340
    %342 = vmatmul.f32.gmra.mxu0 %v212
    %v343 = vpop.f32.mrf.mxu0
    %v344 = vadd.f32 %v315, %v343
    %345 = vdwg.mxu0
    %v346 = vmax.f32 %v277, 0.0
    %v347 = vmax.f32 %v335, 0.0
    %v348 = vmax.f32 %v280, 0.0
    %v349 = vmax.f32 %v338, 0.0
    %v350 = vmax.f32 %v283, 0.0
    %v351 = vmax.f32 %v341, 0.0
    %v352 = vmax.f32 %v286, 0.0
    %v353 = vmax.f32 %v344, 0.0
    %354 = vmatpush.xpose.msra.mxu0 0.0
    %355 = vmatpush.xpose.msra.mxu0 0.0
    %356 = vmatpush.xpose.msra.mxu0 0.0
    %357 = vmatpush.xpose.msra.mxu0 0.0
    %358 = vmatpush.xpose.msra.mxu0 0.0
    %359 = vmatpush.xpose.msra.mxu0 0.0
    %360 = vmatpush.xpose.msra.mxu0 0.0
    %361 = vmatpush.xpose.msra.mxu0 0.0
    %362 = vmatpush.xpose.msra.mxu0 0.0
    %363 = vmatpush.xpose.msra.mxu0 0.0
    %364 = vmatpush.xpose.msra.mxu0 0.0
    %365 = vmatpush.xpose.msra.mxu0 0.0
    %366 = vmatpush.xpose.msra.mxu0 %v352
    %367 = vmatpush.xpose.msra.mxu0 %v350
    %368 = vmatpush.xpose.msra.mxu0 %v348
    %369 = vmatpush.xpose.msra.mxu0 %v346
    %370 = vmatmul.f32.gmra.mxu0 1.0
    %v371 = vpop.f32.mrf.mxu0
    %v372 = vadd.f32 0.0, %v371
    %373 = vdwg.mxu0
    %374 = vmatpush.xpose.msra.mxu0 0.0
    %375 = vmatpush.xpose.msra.mxu0 0.0
    %376 = vmatpush.xpose.msra.mxu0 0.0
    %377 = vmatpush.xpose.msra.mxu0 0.0
    %378 = vmatpush.xpose.msra.mxu0 0.0
    %379 = vmatpush.xpose.msra.mxu0 0.0
    %380 = vmatpush.xpose.msra.mxu0 0.0
    %381 = vmatpush.xpose.msra.mxu0 0.0
    %382 = vmatpush.xpose.msra.mxu0 0.0
    %383 = vmatpush.xpose.msra.mxu0 0.0
    %384 = vmatpush.xpose.msra.mxu0 0.0
    %385 = vmatpush.xpose.msra.mxu0 0.0
    %386 = vmatpush.xpose.msra.mxu0 %v353
    %387 = vmatpush.xpose.msra.mxu0 %v351
    %388 = vmatpush.xpose.msra.mxu0 %v349
    %389 = vmatpush.xpose.msra.mxu0 %v347
    %390 = vmatmul.f32.gmra.mxu0 1.0
    %v391 = vpop.f32.mrf.mxu0
    %v392 = vadd.f32 %v372, %v391
    %393 = vdwg.mxu0
    %s394 = scalar_lea.vmem [#allocation2], 8
    %v395 = vld [vmem:[%s394] sm:$0xff]
    %397 = vst [vmem:[#allocation1] ss:$2 sm:$0xff] %v395
    %v398 = vld.sshfl [vmem:[#allocation1] sm:$0xff pattern:$0x75316420]
    %v399 = vld.sshfl [vmem:[#allocation1 + $0x8] sm:$0xff pattern:$0x75316420]
    %v400 = vsel %vm151, %v398, 0
    %v402 = vsel %vm151, %v399, 0
    %404 = vmatpush.msra.mxu0 0.0
    %405 = vmatpush.msra.mxu0 0.0
    %406 = vmatpush.msra.mxu0 0.0
    %407 = vmatpush.msra.mxu0 0.0
    %408 = vmatpush.msra.mxu0 0.0
    %409 = vmatpush.msra.mxu0 0.0
    %410 = vmatpush.msra.mxu0 0.0
    %411 = vmatpush.msra.mxu0 0.0
    %412 = vmatpush.msra.mxu0 0.0
    %413 = vmatpush.msra.mxu0 0.0
    %414 = vmatpush.msra.mxu0 0.0
    %415 = vmatpush.msra.mxu0 0.0
    %416 = vmatpush.msra.mxu0 0.0
    %417 = vmatpush.msra.mxu0 0.0
    %418 = vmatpush.msra.mxu0 0.0
    %419 = vmatpush.msra.mxu0 %v400
    %420 = vmatmul.f32.gmra.mxu0 %v140
    %v421 = vpop.f32.mrf.mxu0
    %v422 = vadd.f32 0.0, %v421
    %423 = vmatmul.f32.gmra.mxu0 %v143
    %v424 = vpop.f32.mrf.mxu0
    %v425 = vadd.f32 0.0, %v424
    %426 = vmatmul.f32.gmra.mxu0 %v146
    %v427 = vpop.f32.mrf.mxu0
    %v428 = vadd.f32 0.0, %v427
    %429 = vmatmul.f32.gmra.mxu0 %v149
    %v430 = vpop.f32.mrf.mxu0
    %v431 = vadd.f32 0.0, %v430
    %432 = vdwg.mxu0
    %433 = vmatpush.msra.mxu0 0.0
    %434 = vmatpush.msra.mxu0 0.0
    %435 = vmatpush.msra.mxu0 0.0
    %436 = vmatpush.msra.mxu0 0.0
    %437 = vmatpush.msra.mxu0 0.0
    %438 = vmatpush.msra.mxu0 0.0
    %439 = vmatpush.msra.mxu0 0.0
    %440 = vmatpush.msra.mxu0 0.0
    %441 = vmatpush.msra.mxu0 0.0
    %442 = vmatpush.msra.mxu0 0.0
    %443 = vmatpush.msra.mxu0 0.0
    %444 = vmatpush.msra.mxu0 0.0
    %445 = vmatpush.msra.mxu0 0.0
    %446 = vmatpush.msra.mxu0 0.0
    %447 = vmatpush.msra.mxu0 0.0
    %448 = vmatpush.msra.mxu0 %v402
    %449 = vmatmul.f32.gmra.mxu0 %v140
    %v450 = vpop.f32.mrf.mxu0
    %v451 = vadd.f32 0.0, %v450
    %452 = vmatmul.f32.gmra.mxu0 %v143
    %v453 = vpop.f32.mrf.mxu0
    %v454 = vadd.f32 0.0, %v453
    %455 = vmatmul.f32.gmra.mxu0 %v146
    %v456 = vpop.f32.mrf.mxu0
    %v457 = vadd.f32 0.0, %v456
    %458 = vmatmul.f32.gmra.mxu0 %v149
    %v459 = vpop.f32.mrf.mxu0
    %v460 = vadd.f32 0.0, %v459
    %461 = vdwg.mxu0
    %462 = vmatpush.msra.mxu0 %v99
    %463 = vmatpush.msra.mxu0 %v97
    %464 = vmatpush.msra.mxu0 %v95
    %465 = vmatpush.msra.mxu0 %v93
    %466 = vmatpush.msra.mxu0 %v91
    %467 = vmatpush.msra.mxu0 %v89
    %468 = vmatpush.msra.mxu0 %v87
    %469 = vmatpush.msra.mxu0 %v85
    %470 = vmatpush.msra.mxu0 %v83
    %471 = vmatpush.msra.mxu0 %v81
    %472 = vmatpush.msra.mxu0 %v79
    %473 = vmatpush.msra.mxu0 %v77
    %474 = vmatpush.msra.mxu0 %v75
    %475 = vmatpush.msra.mxu0 %v73
    %476 = vmatpush.msra.mxu0 %v71
    %477 = vmatpush.msra.mxu0 %v69
    %478 = vmatmul.f32.gmra.mxu0 %v422
    %v479 = vpop.f32.mrf.mxu0
    %v480 = vadd.f32 %v216, %v479
    %481 = vmatmul.f32.gmra.mxu0 %v425
    %v482 = vpop.f32.mrf.mxu0
    %v483 = vadd.f32 %v220, %v482
    %484 = vmatmul.f32.gmra.mxu0 %v428
    %v485 = vpop.f32.mrf.mxu0
    %v486 = vadd.f32 %v224, %v485
    %487 = vmatmul.f32.gmra.mxu0 %v431
    %v488 = vpop.f32.mrf.mxu0
    %v489 = vadd.f32 %v228, %v488
    %490 = vdwg.mxu0
    %491 = vmatpush.msra.mxu0 %v131
    %492 = vmatpush.msra.mxu0 %v129
    %493 = vmatpush.msra.mxu0 %v127
    %494 = vmatpush.msra.mxu0 %v125
    %495 = vmatpush.msra.mxu0 %v123
    %496 = vmatpush.msra.mxu0 %v121
    %497 = vmatpush.msra.mxu0 %v119
    %498 = vmatpush.msra.mxu0 %v117
    %499 = vmatpush.msra.mxu0 %v115
    %500 = vmatpush.msra.mxu0 %v113
    %501 = vmatpush.msra.mxu0 %v111
    %502 = vmatpush.msra.mxu0 %v109
    %503 = vmatpush.msra.mxu0 %v107
    %504 = vmatpush.msra.mxu0 %v105
    %505 = vmatpush.msra.mxu0 %v103
    %506 = vmatpush.msra.mxu0 %v101
    %507 = vmatmul.f32.gmra.mxu0 %v451
    %v508 = vpop.f32.mrf.mxu0
    %v509 = vadd.f32 %v480, %v508
    %510 = vmatmul.f32.gmra.mxu0 %v454
    %v511 = vpop.f32.mrf.mxu0
    %v512 = vadd.f32 %v483, %v511
    %513 = vmatmul.f32.gmra.mxu0 %v457
    %v514 = vpop.f32.mrf.mxu0
    %v515 = vadd.f32 %v486, %v514
    %516 = vmatmul.f32.gmra.mxu0 %v460
    %v517 = vpop.f32.mrf.mxu0
    %v518 = vadd.f32 %v489, %v517
    %519 = vdwg.mxu0
    %520 = vmatpush.msra.mxu0 %v100
    %521 = vmatpush.msra.mxu0 %v98
    %522 = vmatpush.msra.mxu0 %v96
    %523 = vmatpush.msra.mxu0 %v94
    %524 = vmatpush.msra.mxu0 %v92
    %525 = vmatpush.msra.mxu0 %v90
    %526 = vmatpush.msra.mxu0 %v88
    %527 = vmatpush.msra.mxu0 %v86
    %528 = vmatpush.msra.mxu0 %v84
    %529 = vmatpush.msra.mxu0 %v82
    %530 = vmatpush.msra.mxu0 %v80
    %531 = vmatpush.msra.mxu0 %v78
    %532 = vmatpush.msra.mxu0 %v76
    %533 = vmatpush.msra.mxu0 %v74
    %534 = vmatpush.msra.mxu0 %v72
    %535 = vmatpush.msra.mxu0 %v70
    %536 = vmatmul.f32.gmra.mxu0 %v422
    %v537 = vpop.f32.mrf.mxu0
    %v538 = vadd.f32 %v216, %v537
    %539 = vmatmul.f32.gmra.mxu0 %v425
    %v540 = vpop.f32.mrf.mxu0
    %v541 = vadd.f32 %v220, %v540
    %542 = vmatmul.f32.gmra.mxu0 %v428
    %v543 = vpop.f32.mrf.mxu0
    %v544 = vadd.f32 %v224, %v543
    %545 = vmatmul.f32.gmra.mxu0 %v431
    %v546 = vpop.f32.mrf.mxu0
    %v547 = vadd.f32 %v228, %v546
    %548 = vdwg.mxu0
    %549 = vmatpush.msra.mxu0 %v132
    %550 = vmatpush.msra.mxu0 %v130
    %551 = vmatpush.msra.mxu0 %v128
    %552 = vmatpush.msra.mxu0 %v126
    %553 = vmatpush.msra.mxu0 %v124
    %554 = vmatpush.msra.mxu0 %v122
    %555 = vmatpush.msra.mxu0 %v120
    %556 = vmatpush.msra.mxu0 %v118
    %557 = vmatpush.msra.mxu0 %v116
    %558 = vmatpush.msra.mxu0 %v114
    %559 = vmatpush.msra.mxu0 %v112
    %560 = vmatpush.msra.mxu0 %v110
    %561 = vmatpush.msra.mxu0 %v108
    %562 = vmatpush.msra.mxu0 %v106
    %563 = vmatpush.msra.mxu0 %v104
    %564 = vmatpush.msra.mxu0 %v102
    %565 = vmatmul.f32.gmra.mxu0 %v451
    %v566 = vpop.f32.mrf.mxu0
    %v567 = vadd.f32 %v538, %v566
    %568 = vmatmul.f32.gmra.mxu0 %v454
    %v569 = vpop.f32.mrf.mxu0
    %v570 = vadd.f32 %v541, %v569
    %571 = vmatmul.f32.gmra.mxu0 %v457
    %v572 = vpop.f32.mrf.mxu0
    %v573 = vadd.f32 %v544, %v572
    %574 = vmatmul.f32.gmra.mxu0 %v460
    %v575 = vpop.f32.mrf.mxu0
    %v576 = vadd.f32 %v547, %v575
    %577 = vdwg.mxu0
    %v578 = vmax.f32 %v509, 0.0
    %v579 = vmax.f32 %v567, 0.0
    %v580 = vmax.f32 %v512, 0.0
    %v581 = vmax.f32 %v570, 0.0
    %v582 = vmax.f32 %v515, 0.0
    %v583 = vmax.f32 %v573, 0.0
    %v584 = vmax.f32 %v518, 0.0
    %v585 = vmax.f32 %v576, 0.0
    %586 = vmatpush.xpose.msra.mxu0 0.0
    %587 = vmatpush.xpose.msra.mxu0 0.0
    %588 = vmatpush.xpose.msra.mxu0 0.0
    %589 = vmatpush.xpose.msra.mxu0 0.0
    %590 = vmatpush.xpose.msra.mxu0 0.0
    %591 = vmatpush.xpose.msra.mxu0 0.0
    %592 = vmatpush.xpose.msra.mxu0 0.0
    %593 = vmatpush.xpose.msra.mxu0 0.0
    %594 = vmatpush.xpose.msra.mxu0 0.0
    %595 = vmatpush.xpose.msra.mxu0 0.0
    %596 = vmatpush.xpose.msra.mxu0 0.0
    %597 = vmatpush.xpose.msra.mxu0 0.0
    %598 = vmatpush.xpose.msra.mxu0 %v584
    %599 = vmatpush.xpose.msra.mxu0 %v582
    %600 = vmatpush.xpose.msra.mxu0 %v580
    %601 = vmatpush.xpose.msra.mxu0 %v578
    %602 = vmatmul.f32.gmra.mxu0 1.0
    %v603 = vpop.f32.mrf.mxu0
    %v604 = vadd.f32 0.0, %v603
    %605 = vdwg.mxu0
    %606 = vmatpush.xpose.msra.mxu0 0.0
    %607 = vmatpush.xpose.msra.mxu0 0.0
    %608 = vmatpush.xpose.msra.mxu0 0.0
    %609 = vmatpush.xpose.msra.mxu0 0.0
    %610 = vmatpush.xpose.msra.mxu0 0.0
    %611 = vmatpush.xpose.msra.mxu0 0.0
    %612 = vmatpush.xpose.msra.mxu0 0.0
    %613 = vmatpush.xpose.msra.mxu0 0.0
    %614 = vmatpush.xpose.msra.mxu0 0.0
    %615 = vmatpush.xpose.msra.mxu0 0.0
    %616 = vmatpush.xpose.msra.mxu0 0.0
    %617 = vmatpush.xpose.msra.mxu0 0.0
    %618 = vmatpush.xpose.msra.mxu0 %v585
    %619 = vmatpush.xpose.msra.mxu0 %v583
    %620 = vmatpush.xpose.msra.mxu0 %v581
    %621 = vmatpush.xpose.msra.mxu0 %v579
    %622 = vmatmul.f32.gmra.mxu0 1.0
    %v623 = vpop.f32.mrf.mxu0
    %v624 = vadd.f32 %v604, %v623
    %625 = vdwg.mxu0
    %v627 = vrot.slane %v624, 7
    %vm629 = vcmask 1040384
    %v630 = vsel %vm629, %v392, %v627
    %v631 = vperm.slane %v65, 0
    %632 = vrot.lane.b32.xlu0 %v65, 112
    %v633 = vpop.permute.xlu0 %632
    %634 = vrot.lane.b32.xlu0 %v66, 112
    %v635 = vpop.permute.xlu0 %634
    %636 = vrot.lane.b32.xlu0 %v67, 112
    %v637 = vpop.permute.xlu0 %636
    %638 = vrot.lane.b32.xlu0 %v68, 112
    %v639 = vpop.permute.xlu0 %638
    %645 = vrot.lane.b32.xlu0 %v631, 96
    %v646 = vpop.permute.xlu0 %645
    %vm648 = vcmask 261120
    %v650 = vsel %vm648, %v630, 0
    %652 = vmatpush.msra.mxu0 0.0
    %653 = vmatpush.msra.mxu0 0.0
    %654 = vmatpush.msra.mxu0 0.0
    %655 = vmatpush.msra.mxu0 0.0
    %656 = vmatpush.msra.mxu0 0.0
    %657 = vmatpush.msra.mxu0 0.0
    %658 = vmatpush.msra.mxu0 0.0
    %659 = vmatpush.msra.mxu0 0.0
    %660 = vmatpush.msra.mxu0 0.0
    %661 = vmatpush.msra.mxu0 0.0
    %662 = vmatpush.msra.mxu0 0.0
    %663 = vmatpush.msra.mxu0 0.0
    %664 = vmatpush.msra.mxu0 %v639
    %665 = vmatpush.msra.mxu0 %v637
    %666 = vmatpush.msra.mxu0 %v635
    %667 = vmatpush.msra.mxu0 %v633
    %668 = vmatmul.f32.gmra.mxu0 %v650
    %v669 = vpop.f32.mrf.mxu0
    %v670 = vadd.f32 %v646, %v669
    %671 = vdwg.mxu0
    %vm672 = vcmask 123904
    %673 = vst.msk [vmem:[#allocation9] sm:$0x3] %vm672, %v670
    %674 = vrot.lane.b32.xlu0 %v65, 80
    %v675 = vpop.permute.xlu0 %674
    %676 = vrot.lane.b32.xlu0 %v66, 80
    %v677 = vpop.permute.xlu0 %676
    %680 = vrot.lane.b32.xlu0 %v631, 72
    %v681 = vpop.permute.xlu0 %680
    %vm683 = vcmask 130048
    %v685 = vsel %vm683, %v670, 0
    %687 = vmatpush.msra.mxu0 0.0
    %688 = vmatpush.msra.mxu0 0.0
    %689 = vmatpush.msra.mxu0 0.0
    %690 = vmatpush.msra.mxu0 0.0
    %691 = vmatpush.msra.mxu0 0.0
    %692 = vmatpush.msra.mxu0 0.0
    %693 = vmatpush.msra.mxu0 0.0
    %694 = vmatpush.msra.mxu0 0.0
    %695 = vmatpush.msra.mxu0 0.0
    %696 = vmatpush.msra.mxu0 0.0
    %697 = vmatpush.msra.mxu0 0.0
    %698 = vmatpush.msra.mxu0 0.0
    %699 = vmatpush.msra.mxu0 0.0
    %700 = vmatpush.msra.mxu0 0.0
    %701 = vmatpush.msra.mxu0 %v677
    %702 = vmatpush.msra.mxu0 %v675
    %703 = vmatmul.f32.gmra.mxu0 %v685
    %v704 = vpop.f32.mrf.mxu0
    %v705 = vadd.f32 %v681, %v704
    %706 = vdwg.mxu0
    %vm707 = vcmask 58368
    %v708 = vsel %vm707, %v705, -inf
    %709 = vmax.xlane.f32.xlu0 %v708
    %v710 = vpop.xlane.xlu0 %709
    %v711 = vsub.f32 %v705, %v710
    %v712 = vmul.f32 %v711, 1.442695
    %v713 = vpow.pop %v712
    %v714 = vsel %vm707, %v713, 0.0
    %715 = vadd.xlane.f32.xlu0 %v714
    %v716 = vpop.xlane.xlu0 %715
    %v717 = vrcp.pop %v716
    %v718 = vmul.f32 %v713, %v717
    %719 = vst.msk [vmem:[#allocation8] sm:$0x3] %vm707, %v718
    // Predicated region
    $region26: #{tpu_custom_call.1} parent=1 // pred_check
      _
    $region27: #{tpu_custom_call.1} parent=1 // pred_check_branch
      %721 = sbr.rel (0) target = $region29
    $region28: #{tpu_custom_call.1} parent=1 // pred_region
      %723 = vsyncadd [#allocation4], 0
      %s725 = sshll.u32 [#allocation8], 4
      %s726 = int_to_ptr.vmem [resolvable:$true] %s725
      %s727 = sshll.u32 %s3, 4
      %s728 = int_to_ptr.hbm [resolvable:$true] %s727
      %730 = dma.vmem_to_hbm [thread:$0]  %s726, 32, %s728, [#allocation4]
    $region29: #{tpu_custom_call.1} parent=1 // pred_fallthru
      _
    // Predicated region
    $region30: #{tpu_custom_call.1} parent=1 // pred_check
      _
    $region31: #{tpu_custom_call.1} parent=1 // pred_check_branch
      %732 = sbr.rel (0) target = $region33
    $region32: #{tpu_custom_call.1} parent=1 // pred_region
      %734 = vsyncadd [#allocation10], 0
      %s736 = sshll.u32 [#allocation9], 4
      %s737 = int_to_ptr.vmem [resolvable:$true] %s736
      %s738 = sshll.u32 %s4, 4
      %s739 = int_to_ptr.hbm [resolvable:$true] %s738
      %741 = dma.vmem_to_hbm [thread:$0]  %s737, 32, %s739, [#allocation10]
    $region33: #{tpu_custom_call.1} parent=1 // pred_fallthru
      _
    // Predicated region
    $region34: #{tpu_custom_call.1} parent=1 // pred_check
      _
    $region35: #{tpu_custom_call.1} parent=1 // pred_check_branch
      %743 = sbr.rel (0) target = $region37
    $region36: #{tpu_custom_call.1} parent=1 // pred_region
      %745 = dma.done [#allocation4], 32
    $region37: #{tpu_custom_call.1} parent=1 // pred_fallthru
      _
    // Predicated region
    $region38: #{tpu_custom_call.1} parent=1 // pred_check
      _
    $region39: #{tpu_custom_call.1} parent=1 // pred_check_branch
      %747 = sbr.rel (0) target = $region41
    $region40: #{tpu_custom_call.1} parent=1 // pred_region
      %749 = dma.done [#allocation10], 32
    $region41: #{tpu_custom_call.1} parent=1 // pred_fallthru
      _
    %750 = vsyncpa [#allocation3], 1
    %751 = vsyncpa [#allocation6], 1
    %752 = vsyncpa [#allocation4], 1
    %753 = vsyncpa [#allocation10], 1

</llo_original>
